<compile_context>
chip_gen: v7x
topology: tpu7x:2x2x1
jax: 0.10.0
libtpu: 0.0.40
codegen_flags: <defaults>
</compile_context>

<pallas_src>
import functools

import numpy as np
import jax
import jax.numpy as jnp
from jax import lax
from jax.experimental import pallas as pl
from jax.experimental.pallas import tpu as pltpu

LEAKY_SLOPE = 0.2
BN_EPS = 1e-5


def _round_up(v, m):
    return (v + m - 1) // m * m


def _cdiv(a, b):
    return -(-a // b)


def _vmem_capacity_bytes():
    try:
        cap = int(pltpu.get_tpu_info().vmem_capacity_bytes)
        if cap > 0:
            return cap
    except Exception:
        pass
    return 64 * 1024 * 1024  # safe lower bound (v7x)


# ---------------------------------------------------------------------------
# Kernel: LeakyReLU -> 4 shifted MXU matmuls -> conv tile + centered BN partial stats.
# ---------------------------------------------------------------------------
def _conv_bn_kernel(wq, zmain_ref, zhalo_ref, mask_ref, w_ref, y_ref, sum_ref, m2_ref):
    # zmain: (KC, TILE)   contiguous columns of the space-to-depth input
    # zhalo: (KC, HALO)   next HALO columns (lane halo for the shifted taps)
    # mask : (1, TILE)    1.0 on real output columns, 0.0 on junk/padding lanes
    # w    : (4, COUT, KC) one (COUT, KC) matrix per tap shift, resident across grid
    tile = y_ref.shape[-1]
    z = jnp.concatenate([zmain_ref[...], zhalo_ref[...]], axis=-1)   # (KC, TILE+HALO)
    z = jnp.where(z > 0, z, LEAKY_SLOPE * z)                          # LeakyReLU(0.2), once

    acc = None
    for s, off in enumerate((0, 1, wq, wq + 1)):                      # taps == lane shifts
        part = jnp.dot(w_ref[s], z[:, off:off + tile],
                       preferred_element_type=jnp.float32)
        acc = part if acc is None else acc + part
    y_ref[...] = acc.astype(y_ref.dtype)

    # Per-tile centered statistics (combined with Chan's formula outside the kernel).
    mask = mask_ref[...]                                              # (1, TILE)
    cnt = jnp.maximum(jnp.sum(mask, axis=1, keepdims=True), 1.0)      # (1, 1)
    s_c = jnp.sum(acc * mask, axis=1, keepdims=True)                  # (COUT, 1)
    mean_t = s_c / cnt
    d = (acc - mean_t) * mask
    sum_ref[...] = s_c[None]
    m2_ref[...] = jnp.sum(d * d, axis=1, keepdims=True)[None]


# ---------------------------------------------------------------------------
# Wrapper
# ---------------------------------------------------------------------------
@functools.partial(jax.jit,
                   static_argnames=("stride", "padding", "tile_m_max", "compute_dtype"))
def conv2d_block_forward(x, weight, *, stride=2, padding=1, tile_m_max=None,
                         compute_dtype=None):
    """x: (N, C, H, W); weight: (Cout, Cin, 4, 4) torch layout.  Default Conv2DBlock config."""
    n, c, h, w = x.shape
    cout, cin, kh, kw = weight.shape
    assert cin == c and kh == 4 and kw == 4 and stride == 2, (
        "kernel implements the Conv2DBlock default: kernel_size=4, stride=2")
    assert (h + 2 * padding) % 2 == 0 and (w + 2 * padding) % 2 == 0

    h_out = (h + 2 * padding - kh) // stride + 1
    w_out = (w + 2 * padding - kw) // stride + 1
    hq = (h + 2 * padding) // 2                    # = h_out + 1 for p=1
    wq = (w + 2 * padding) // 2
    m = n * h_out * w_out                          # true BN sample count
    m_hat = n * hq * wq                            # inflated column count seen by the kernel

    out_dtype = x.dtype
    if compute_dtype is None:
        compute_dtype = x.dtype
    compute_dtype = jnp.dtype(compute_dtype)
    in_item = compute_dtype.itemsize
    sub = 16 if in_item == 2 else 8                # sublane multiple (bf16 packs 2x)
    kc = 4 * c
    kc_pad = _round_up(kc, sub)                    # contraction dim: sublane pad only
    cout_pad = _round_up(cout, sub)
    # Store the conv intermediate in bf16 only when the whole path is bf16.
    inter_dtype = (jnp.dtype(jnp.bfloat16)
                   if (compute_dtype == jnp.bfloat16 and jnp.dtype(out_dtype) == jnp.bfloat16)
                   else jnp.dtype(jnp.float32))
    inter_item = inter_dtype.itemsize

    # --- tile / VMEM sizing (generation aware: v7x 64 MiB, v5e/v6e 128 MiB) --------------
    halo = _round_up(wq + 1, 128)                  # covers the max lane shift wq+1
    vmem_cap = _vmem_capacity_bytes()
    vmem_limit = min(int(vmem_cap * 0.75), 112 * 1024 * 1024)
    budget = int(vmem_limit * 0.6)
    w_bytes = 2 * 4 * cout_pad * kc_pad * in_item            # resident weight, double-buffered
    fixed = w_bytes + 2 * kc_pad * halo * in_item + 256 * 1024
    per_lane = (2 * kc_pad * in_item                         # z main block, double buffered
                + 3 * kc_pad * in_item                       # concat + shifted-slice temps
                + 2 * cout_pad * inter_item                  # y output block, double buffered
                + 3 * cout_pad * 4                           # f32 accumulator + stat temps
                + 2 * 4)                                     # mask
    avail = max(budget - fixed, per_lane * 128)
    tile_cap = max(128, min(8192, avail // per_lane))
    tile_cap = max(halo, (tile_cap // halo) * halo)
    if tile_m_max is not None:
        tile_cap = max(halo, min(tile_cap, _round_up(tile_m_max, halo)))

    num_tiles = max(1, _cdiv(m_hat, tile_cap))
    if num_tiles == 1 and m_hat > halo:            # keep >=2 "parallel" tiles for megacore
        num_tiles = 2
    tile_m = _round_up(_cdiv(m_hat, num_tiles), halo)        # minimize last-tile padding
    num_tiles = _cdiv(m_hat, tile_m)
    m_hat_pad = num_tiles * tile_m
    z_cols = m_hat_pad + halo
    halo_blocks_per_tile = tile_m // halo

    # --- XLA prep: pad + stride-2 space-to-depth relayout (~1x input bytes, no im2col) ----
    x_pad = jnp.pad(x, ((0, 0), (0, 0), (padding, padding), (padding, padding)))
    zt = x_pad.reshape(n, c, hq, 2, wq, 2)                   # (n, ci, p, a, q, b)
    zt = jnp.transpose(zt, (3, 5, 1, 0, 2, 4))               # (a, b, ci, n, p, q)
    zt = zt.reshape(kc, m_hat).astype(compute_dtype)
    zt = jnp.pad(zt, ((0, kc_pad - kc), (0, z_cols - m_hat)))

    # weight (Cout, C, 4, 4) -> per-shift matrices Ws[dh*2+dw][co, (a*2+b)*C + ci]
    wr = weight.reshape(cout, c, 2, 2, 2, 2)                 # (co, ci, dh, a, dw, b)
    wr = jnp.transpose(wr, (2, 4, 0, 3, 5, 1)).reshape(4, cout, kc)
    wr = jnp.pad(wr, ((0, 0), (0, cout_pad - cout), (0, kc_pad - kc))).astype(compute_dtype)

    # lane-validity mask: drops the ho==Ho / wo==Wo junk columns and the tile padding
    pq = jnp.arange(hq * wq, dtype=jnp.int32)
    valid = ((pq // wq) < h_out) & ((pq % wq) < w_out)
    mask = jnp.tile(valid, (n,))
    mask = jnp.pad(mask, (0, m_hat_pad - m_hat)).astype(jnp.float32).reshape(1, m_hat_pad)

    cost = pl.CostEstimate(
        flops=2 * 4 * cout_pad * kc_pad * m_hat_pad,
        transcendentals=0,
        bytes_accessed=(kc_pad * z_cols * in_item
                        + 4 * cout_pad * kc_pad * in_item
                        + cout_pad * m_hat_pad * inter_item
                        + m_hat_pad * 4
                        + 2 * num_tiles * cout_pad * 4),
    )

    kernel = functools.partial(_conv_bn_kernel, wq)
    y_hat, part_sum, part_m2 = pl.pallas_call(
        kernel,
        grid=(num_tiles,),
        in_specs=[
            pl.BlockSpec((kc_pad, tile_m), lambda i: (0, i)),
            pl.BlockSpec((kc_pad, halo), lambda i: (0, (i + 1) * halo_blocks_per_tile)),
            pl.BlockSpec((1, tile_m), lambda i: (0, i)),
            pl.BlockSpec((4, cout_pad, kc_pad), lambda i: (0, 0, 0)),   # resident weight
        ],
        out_specs=(
            pl.BlockSpec((cout_pad, tile_m), lambda i: (0, i)),
            pl.BlockSpec((1, cout_pad, 1), lambda i: (i, 0, 0)),
            pl.BlockSpec((1, cout_pad, 1), lambda i: (i, 0, 0)),
        ),
        out_shape=(
            jax.ShapeDtypeStruct((cout_pad, m_hat_pad), inter_dtype),
            jax.ShapeDtypeStruct((num_tiles, cout_pad, 1), jnp.float32),
            jax.ShapeDtypeStruct((num_tiles, cout_pad, 1), jnp.float32),
        ),
        compiler_params=pltpu.CompilerParams(
            dimension_semantics=("parallel",),
            vmem_limit_bytes=vmem_limit,
        ),
        cost_estimate=cost,
    )(zt, zt, mask, wr)

    # --- BatchNorm2d(affine=False) batch stats: Chan combine of per-tile centered sums ----
    cnt_t = mask.reshape(num_tiles, tile_m).sum(axis=-1)               # (T,)
    sum_t = part_sum[:, :, 0]                                          # (T, Cout_pad)
    m2_t = part_m2[:, :, 0]
    mean_t = sum_t / jnp.maximum(cnt_t, 1.0)[:, None]
    mean = jnp.sum(sum_t, axis=0) / m
    m2 = jnp.sum(m2_t + cnt_t[:, None] * (mean_t - mean[None, :]) ** 2, axis=0)
    inv = lax.rsqrt(m2 / m + BN_EPS)

    # --- fused XLA epilogue: normalize + drop junk rows/cols + NCHW transpose --------------
    yv = y_hat[:cout, :m_hat].astype(jnp.float32).reshape(cout, n, hq, wq)
    yv = yv[:, :, :h_out, :w_out]
    out = (yv - mean[:cout, None, None, None]) * inv[:cout, None, None, None]
    return jnp.transpose(out, (1, 0, 2, 3)).astype(out_dtype)


def _reference(x, weight, *, stride=2, padding=1):
    """Pure-JAX reference mirroring the PyTorch module (training-mode BN)."""
    xr = jnp.where(x > 0, x, LEAKY_SLOPE * x)
    y = lax.conv_general_dilated(
        xr, weight,
        window_strides=(stride, stride),
        padding=[(padding, padding), (padding, padding)],
        dimension_numbers=("NCHW", "OIHW", "NCHW"),
    )
    mean = jnp.mean(y, axis=(0, 2, 3), keepdims=True)
    var = jnp.mean((y - mean) ** 2, axis=(0, 2, 3), keepdims=True)
    return (y - mean) * lax.rsqrt(var + BN_EPS)


if __name__ == "__main__":
    key = jax.random.PRNGKey(0)
    kx, kw_ = jax.random.split(key)
    N, CIN, H, W = 2, 4, 16, 16
    COUT, K = 8, 4

    x = jax.random.normal(kx, (N, CIN, H, W), dtype=jnp.float32)
    fan_in = CIN * K * K
    bound = 1.0 / np.sqrt(fan_in)
    weight = jax.random.uniform(kw_, (COUT, CIN, K, K), dtype=jnp.float32,
                                minval=-bound, maxval=bound)

    out = jax.block_until_ready(conv2d_block_forward(x, weight))
    ref = jax.block_until_ready(_reference(x, weight))
    np.testing.assert_allclose(np.asarray(out), np.asarray(ref), rtol=1e-4, atol=1e-4)
    assert out.shape == (N, COUT, H // 2, W // 2)

    # Multi-tile path (grid > 1): exercises the lane halo + cross-tile BN stat combine.
    x2 = jax.random.normal(jax.random.PRNGKey(1), (2, 4, 32, 32), dtype=jnp.float32)
    out2 = jax.block_until_ready(conv2d_block_forward(x2, weight, tile_m_max=128))
    ref2 = jax.block_until_ready(_reference(x2, weight))
    np.testing.assert_allclose(np.asarray(out2), np.asarray(ref2), rtol=1e-4, atol=1e-4)

    # bf16 operand path (recommended on v6e/v7x): functional smoke + loose accuracy check.
    out3 = jax.block_until_ready(
        conv2d_block_forward(x2.astype(jnp.bfloat16), weight.astype(jnp.bfloat16),
                             compute_dtype=jnp.bfloat16))
    assert out3.shape == ref2.shape and out3.dtype == jnp.bfloat16
    d3 = np.abs(np.asarray(out3, dtype=np.float32) - np.asarray(ref2))
    assert np.isfinite(np.asarray(out3, dtype=np.float32)).all()
    assert d3.mean() < 0.05, d3.mean()

    print("KERNEL_OK")
</pallas_src>

<mosaic_0001>
module attributes {stable_mosaic.version = 11 : i64} {
  func.func @_conv_bn_kernel(%arg0: i32, %arg1: memref<16x128xf32, #tpu.memory_space<vmem>>, %arg2: memref<16x128xf32, #tpu.memory_space<vmem>>, %arg3: memref<1x128xf32, #tpu.memory_space<vmem>>, %arg4: memref<4x8x16xf32, #tpu.memory_space<vmem>>, %arg5: memref<8x128xf32, #tpu.memory_space<vmem>>, %arg6: memref<1x8x1xf32, #tpu.memory_space<vmem>>, %arg7: memref<1x8x1xf32, #tpu.memory_space<vmem>>) attributes {dimension_semantics = [#tpu.dimension_semantics<parallel>], iteration_bounds = array<i64: 2>, scalar_prefetch = 0 : i64, scratch_operands = 0 : i64, tpu.core_type = #tpu.core_type<tc>, window_params = [{transform_indices = @transform_0, window_bounds = array<i64: 16, 128>}, {transform_indices = @transform_1, window_bounds = array<i64: 16, 128>}, {transform_indices = @transform_2, window_bounds = array<i64: 1, 128>}, {pipeline_mode = #tpu.pipeline_mode<synchronous>, transform_indices = @transform_3, window_bounds = array<i64: 4, 8, 16>}, {transform_indices = @transform_4, window_bounds = array<i64: 8, 128>}, {transform_indices = @transform_5, window_bounds = array<i64: 1, 8, 1>}, {transform_indices = @transform_6, window_bounds = array<i64: 1, 8, 1>}]} {
    %c0 = arith.constant 0 : index
    %c0_0 = arith.constant 0 : index
    %0 = vector.load %arg1[%c0, %c0_0] : memref<16x128xf32, #tpu.memory_space<vmem>>, vector<16x128xf32>
    %c0_1 = arith.constant 0 : index
    %c0_2 = arith.constant 0 : index
    %1 = vector.load %arg2[%c0_1, %c0_2] : memref<16x128xf32, #tpu.memory_space<vmem>>, vector<16x128xf32>
    %2 = tpu.concatenate %0, %1 in 1 : vector<16x128xf32>, vector<16x128xf32> -> vector<16x256xf32>
    %cst = arith.constant 0.000000e+00 : f32
    %3 = vector.broadcast %cst : f32 to vector<16x256xf32>
    %4 = arith.cmpf ogt, %2, %3 : vector<16x256xf32>
    %cst_3 = arith.constant 2.000000e-01 : f32
    %5 = vector.broadcast %cst_3 : f32 to vector<16x256xf32>
    %6 = arith.mulf %5, %2 : vector<16x256xf32>
    %7 = arith.select %4, %2, %6 : vector<16x256xi1>, vector<16x256xf32>
    %c0_4 = arith.constant 0 : index
    %c0_5 = arith.constant 0 : index
    %c0_6 = arith.constant 0 : index
    %8 = vector.load %arg4[%c0_4, %c0_5, %c0_6] : memref<4x8x16xf32, #tpu.memory_space<vmem>>, vector<1x8x16xf32>
    %9 = vector.shape_cast %8 : vector<1x8x16xf32> to vector<8x16xf32>
    %10 = vector.extract_strided_slice %7 {offsets = [0, 0], sizes = [16, 128], strides = [1, 1]} : vector<16x256xf32> to vector<16x128xf32>
    %cst_7 = arith.constant dense<0.000000e+00> : vector<8x128xf32>
    %11 = tpu.matmul %9, %10, %cst_7 {dimension_numbers = #tpu.dot_dimension_numbers<[1], [0], [0], [1], [0, 0, 1, 1], [], []>} : vector<8x16xf32>, vector<16x128xf32>, vector<8x128xf32> -> vector<8x128xf32>
    %c1 = arith.constant 1 : index
    %c0_8 = arith.constant 0 : index
    %c0_9 = arith.constant 0 : index
    %12 = vector.load %arg4[%c1, %c0_8, %c0_9] : memref<4x8x16xf32, #tpu.memory_space<vmem>>, vector<1x8x16xf32>
    %13 = vector.shape_cast %12 : vector<1x8x16xf32> to vector<8x16xf32>
    %14 = vector.extract_strided_slice %7 {offsets = [0, 1], sizes = [16, 128], strides = [1, 1]} : vector<16x256xf32> to vector<16x128xf32>
    %cst_10 = arith.constant dense<0.000000e+00> : vector<8x128xf32>
    %15 = tpu.matmul %13, %14, %cst_10 {dimension_numbers = #tpu.dot_dimension_numbers<[1], [0], [0], [1], [0, 0, 1, 1], [], []>} : vector<8x16xf32>, vector<16x128xf32>, vector<8x128xf32> -> vector<8x128xf32>
    %16 = arith.addf %11, %15 : vector<8x128xf32>
    %c2 = arith.constant 2 : index
    %c0_11 = arith.constant 0 : index
    %c0_12 = arith.constant 0 : index
    %17 = vector.load %arg4[%c2, %c0_11, %c0_12] : memref<4x8x16xf32, #tpu.memory_space<vmem>>, vector<1x8x16xf32>
    %18 = vector.shape_cast %17 : vector<1x8x16xf32> to vector<8x16xf32>
    %19 = vector.extract_strided_slice %7 {offsets = [0, 9], sizes = [16, 128], strides = [1, 1]} : vector<16x256xf32> to vector<16x128xf32>
    %cst_13 = arith.constant dense<0.000000e+00> : vector<8x128xf32>
    %20 = tpu.matmul %18, %19, %cst_13 {dimension_numbers = #tpu.dot_dimension_numbers<[1], [0], [0], [1], [0, 0, 1, 1], [], []>} : vector<8x16xf32>, vector<16x128xf32>, vector<8x128xf32> -> vector<8x128xf32>
    %21 = arith.addf %16, %20 : vector<8x128xf32>
    %c3 = arith.constant 3 : index
    %c0_14 = arith.constant 0 : index
    %c0_15 = arith.constant 0 : index
    %22 = vector.load %arg4[%c3, %c0_14, %c0_15] : memref<4x8x16xf32, #tpu.memory_space<vmem>>, vector<1x8x16xf32>
    %23 = vector.shape_cast %22 : vector<1x8x16xf32> to vector<8x16xf32>
    %24 = vector.extract_strided_slice %7 {offsets = [0, 10], sizes = [16, 128], strides = [1, 1]} : vector<16x256xf32> to vector<16x128xf32>
    %cst_16 = arith.constant dense<0.000000e+00> : vector<8x128xf32>
    %25 = tpu.matmul %23, %24, %cst_16 {dimension_numbers = #tpu.dot_dimension_numbers<[1], [0], [0], [1], [0, 0, 1, 1], [], []>} : vector<8x16xf32>, vector<16x128xf32>, vector<8x128xf32> -> vector<8x128xf32>
    %26 = arith.addf %21, %25 : vector<8x128xf32>
    %c0_17 = arith.constant 0 : index
    %c0_18 = arith.constant 0 : index
    %27 = vector.load %arg5[%c0_17, %c0_18] : memref<8x128xf32, #tpu.memory_space<vmem>>, vector<8x128xf32>
    tpu.vector_store %arg5[%c0_17, %c0_18], %26 {strides = array<i32>} : memref<8x128xf32, #tpu.memory_space<vmem>>, vector<8x128xf32>,
    %c0_19 = arith.constant 0 : index
    %c0_20 = arith.constant 0 : index
    %28 = vector.load %arg3[%c0_19, %c0_20] : memref<1x128xf32, #tpu.memory_space<vmem>>, vector<1x128xf32>
    %cst_21 = arith.constant dense<0.000000e+00> : vector<1xf32>
    %29 = vector.multi_reduction <add>, %28, %cst_21 [1] : vector<1x128xf32> to vector<1xf32>
    %30 = vector.shape_cast %29 : vector<1xf32> to vector<1x1xf32>
    %cst_22 = arith.constant 1.000000e+00 : f32
    %31 = vector.broadcast %cst_22 : f32 to vector<1x1xf32>
    %32 = arith.maximumf %30, %31 : vector<1x1xf32>
    %33 = vector.broadcast %28 : vector<1x128xf32> to vector<8x128xf32>
    %34 = arith.mulf %26, %33 : vector<8x128xf32>
    %cst_23 = arith.constant dense<0.000000e+00> : vector<8xf32>
    %35 = vector.multi_reduction <add>, %34, %cst_23 [1] : vector<8x128xf32> to vector<8xf32>
    %36 = vector.shape_cast %35 : vector<8xf32> to vector<8x1xf32>
    %37 = vector.broadcast %32 : vector<1x1xf32> to vector<8x1xf32>
    %38 = arith.divf %36, %37 : vector<8x1xf32>
    %39 = vector.broadcast %38 : vector<8x1xf32> to vector<8x128xf32>
    %40 = arith.subf %26, %39 : vector<8x128xf32>
    %41 = vector.broadcast %28 : vector<1x128xf32> to vector<8x128xf32>
    %42 = arith.mulf %40, %41 : vector<8x128xf32>
    %43 = vector.shape_cast %36 : vector<8x1xf32> to vector<1x8x1xf32>
    %c0_24 = arith.constant 0 : index
    %c0_25 = arith.constant 0 : index
    %c0_26 = arith.constant 0 : index
    %44 = vector.load %arg6[%c0_24, %c0_25, %c0_26] : memref<1x8x1xf32, #tpu.memory_space<vmem>>, vector<1x8x1xf32>
    tpu.vector_store %arg6[%c0_24, %c0_25, %c0_26], %43 {strides = array<i32>} : memref<1x8x1xf32, #tpu.memory_space<vmem>>, vector<1x8x1xf32>,
    %45 = arith.mulf %42, %42 : vector<8x128xf32>
    %cst_27 = arith.constant dense<0.000000e+00> : vector<8xf32>
    %46 = vector.multi_reduction <add>, %45, %cst_27 [1] : vector<8x128xf32> to vector<8xf32>
    %47 = vector.shape_cast %46 : vector<8xf32> to vector<8x1xf32>
    %48 = vector.shape_cast %47 : vector<8x1xf32> to vector<1x8x1xf32>
    %c0_28 = arith.constant 0 : index
    %c0_29 = arith.constant 0 : index
    %c0_30 = arith.constant 0 : index
    %49 = vector.load %arg7[%c0_28, %c0_29, %c0_30] : memref<1x8x1xf32, #tpu.memory_space<vmem>>, vector<1x8x1xf32>
    tpu.vector_store %arg7[%c0_28, %c0_29, %c0_30], %48 {strides = array<i32>} : memref<1x8x1xf32, #tpu.memory_space<vmem>>, vector<1x8x1xf32>,
    return
  }
  func.func @transform_0(%arg0: i32) -> (i32, i32) {
    %c0_i32 = arith.constant 0 : i32
    %c0_i32_0 = arith.constant 0 : i32
    return %c0_i32, %arg0 : i32, i32
  }
  func.func @transform_1(%arg0: i32) -> (i32, i32) {
    %c1_i32 = arith.constant 1 : i32
    %0 = arith.addi %arg0, %c1_i32 : i32
    %c1_i32_0 = arith.constant 1 : i32
    %1 = arith.muli %0, %c1_i32_0 : i32
    %c0_i32 = arith.constant 0 : i32
    %c0_i32_1 = arith.constant 0 : i32
    return %c0_i32, %1 : i32, i32
  }
  func.func @transform_2(%arg0: i32) -> (i32, i32) {
    %c0_i32 = arith.constant 0 : i32
    %c0_i32_0 = arith.constant 0 : i32
    return %c0_i32, %arg0 : i32, i32
  }
  func.func @transform_3(%arg0: i32) -> (i32, i32, i32) {
    %c0_i32 = arith.constant 0 : i32
    %c0_i32_0 = arith.constant 0 : i32
    %c0_i32_1 = arith.constant 0 : i32
    %c0_i32_2 = arith.constant 0 : i32
    return %c0_i32, %c0_i32_0, %c0_i32_1 : i32, i32, i32
  }
  func.func @transform_4(%arg0: i32) -> (i32, i32) {
    %c0_i32 = arith.constant 0 : i32
    %c0_i32_0 = arith.constant 0 : i32
    return %c0_i32, %arg0 : i32, i32
  }
  func.func @transform_5(%arg0: i32) -> (i32, i32, i32) {
    %c0_i32 = arith.constant 0 : i32
    %c0_i32_0 = arith.constant 0 : i32
    %c0_i32_1 = arith.constant 0 : i32
    return %arg0, %c0_i32, %c0_i32_0 : i32, i32, i32
  }
  func.func @transform_6(%arg0: i32) -> (i32, i32, i32) {
    %c0_i32 = arith.constant 0 : i32
    %c0_i32_0 = arith.constant 0 : i32
    %c0_i32_1 = arith.constant 0 : i32
    return %arg0, %c0_i32, %c0_i32_0 : i32, i32, i32
  }
}

</mosaic_0001>

<llo_original>
// kernel: tile.9
$region0: #{tile.9}
  %s0 = inlined_call_operand.vmem [shape: pred[2,81], index: 0, kind: input, shape index: {}]
  %s1 = inlined_call_operand.vmem [shape: pred[162], index: 1, kind: output, shape index: {}]
  $region1: #{tile.9} parent=0
    #allocation0 [shape = 'u8[4096]{0}', space=vmem, size = 0x1000, scoped, tag = 'scoped mem for output reshape']
    #allocation1 [shape = 'u8[4096]{0}', space=vmem, size = 0x1000, scoped, tag = 'scoped mem for input reshape']
    %s3 = smul.u32 1, 4
    %s4 = sshllo.u32 0, %s3
    %s5 = sand.u32 %s4, 15
    %p6 = scmp.ne.s32.totalorder %s5, 0
    %s7 = scalar_select %p6, 1, 0
    %s8 = sand.u32 %s4, 240
    %p9 = scmp.ne.s32.totalorder %s8, 0
    %s10 = scalar_select %p9, 2, 0
    %s11 = sor.u32 %s7, %s10
    %v12 = vld [vmem:[%s0] sm:%s11]
    %v13 = vunpack.c.0.s8 %v12
    %v14 = vunpack.c.1.s8 %v12
    %v15 = vunpack.c.2.s8 %v12
    %v16 = vunpack.c.3.s8 %v12
    %17 = vst [vmem:[#allocation1] sm:%s4] %v13
    %v18 = vld [vmem:[#allocation1] sm:$0x1]
    %vm19 = vcmask 662528
    %20 = vst.msk [vmem:[#allocation0] sm:$0x1] %vm19, %v18
    %s21 = scalar_lea.vmem [#allocation1], 1
    %v22 = vld [vmem:[%s21] sm:$0x1]
    %s23 = scalar_lea.vmem [#allocation1], 1
    %v24 = vld [vmem:[%s23] sm:$0x1]
    %vm25 = vcmask 384000
    %v26 = vsel %vm25, %v24, %v22
    %27 = vrot.lane.b32.xlu0 %v26, 81
    %v28 = vpop.permute.xlu0 %27
    %vm29 = vcmask 277504
    %s30 = scalar_lea.vmem [#allocation0], 1
    %31 = vst.msk [vmem:[%s30] sm:$0x1] %vm29, %v28
    %vm32 = vcmask 1048200
    %33 = vst.msk [vmem:[#allocation0] sm:$0x1] %vm32, %v28
    %s35 = smul.u32 1, 4
    %s36 = sshllo.u32 0, %s35
    %s37 = sshrl.u32 %s35, 2
    %v38 = vld [vmem:[#allocation0] sm:%s36]
    %s39 = sshllo.u32 0, %s37
    %v40 = vpack.c.b16 0, %v38
    %v41 = vpack.c.b8 0, %v40
    %42 = vst [vmem:[%s1] sm:%s39] %v41

// kernel: tile.8
$region0: #{tile.8}
  #allocation0 [shape = 's32[1]{0}', space=sflag, size = 0x4, scoped, tag = 'scoped memory for tile.8']
  %s0 = inlined_call_operand.vmem [shape: pred[81], index: 0, kind: input, shape index: {}]
  %s1 = inlined_call_operand.vmem [shape: pred[2,81], index: 1, kind: output, shape index: {}]
  // Predicated region
  $region2: #{tile.8} parent=0 // pred_check
    _
  $region3: #{tile.8} parent=0 // pred_check_branch
    %3 = sbr.rel (0) target = $region5
  $region4: #{tile.8} parent=0 // pred_region
    _
  $region5: #{tile.8} parent=0 // pred_fallthru
    _
  %v4 = vld [vmem:[%s0] ss:$0 sm:$0xff]
  %v6 = vshra.s32 %v4, 0
  %v7 = vand.u32 %v6, 255
  %v8 = vpack.c.b16 0, %v7
  %v9 = vpack.c.b8 0, %v8
  %11 = vst [vmem:[%s1] sm:$0x1] %v9

// kernel: conv2d_block_forward.1
$region0: #{conv2d_block_forward.1}
  #allocation0 [shape = 'u32[]', space=smem, size = 0x4, offset = 0x4, fixed_abs, tag = 'smem constant byte address 0x4 - core index']
  #allocation1 [shape = 'u32[144,128]{1,0:T(1,128)}', space=vmem, size = 0x12000, scoped, tag = 'internal scratch']
  %s0 = inlined_call_operand.vmem [shape: f32[16,384], index: 0, kind: input, shape index: {}, may-alias: {0,1}]
  %s1 = inlined_call_operand.vmem [shape: f32[16,384], index: 1, kind: input, shape index: {}, may-alias: {0,1}]
  %s2 = inlined_call_operand.vmem [shape: f32[1,256], index: 2, kind: input, shape index: {}]
  %s3 = inlined_call_operand.vmem [shape: f32[4,8,16], index: 3, kind: input, shape index: {}]
  %s4 = inlined_call_operand.vmem [shape: f32[8,256], index: 4, kind: output, shape index: {0}]
  %s5 = inlined_call_operand.vmem [shape: f32[2,8,1], index: 5, kind: output, shape index: {1}]
  %s6 = inlined_call_operand.vmem [shape: f32[2,8,1], index: 6, kind: output, shape index: {2}]
  %7 = xla_tuple %s4, %s5, %s6
  %s8 = sld [smem:[#allocation0]]
  $region141: #{conv2d_block_forward.1} parent=0
    _
  %s10 = ssub.s32 1, %s8
  %s11 = scalar_select 0, %s10, %s8
  $region1: #{conv2d_block_forward.1} parent=0
    #allocation2 [shape = 'u8[16384]{0}', space=vmem, size = 0x4000, scoped, tag = 'input window, operand 0']
    #allocation3 [shape = 'u8[16384]{0}', space=vmem, size = 0x4000, scoped, tag = 'input window, operand 1']
    loop: start=0, step=1, limit=4
    $region2: #{conv2d_block_forward.1} parent=1 // loop_pre_header
      _
    $region3: #{conv2d_block_forward.1} parent=1 // loop_header
      %s13 = sphi 0, %s17
      %p14 = scmp.ge.s32.totalorder %s13, 4
      %s23 = sphi 0, %s25
      %s26 = sphi 0, %s23
      %s27 = sphi 0, %s26
      %s43 = sphi 0, %s27
      %s51 = sphi 0, %s53
      %s54 = sphi 0, %s51
      %s55 = sphi 0, %s54
      %s71 = sphi 0, %s55
      %s77 = sphi 0, %s79
      %s80 = sphi 0, %s77
      %s81 = sphi 0, %s80
      %s97 = sphi 0, %s81
      %s101 = sphi 0, %s101
      %s103 = sphi 0, %s101
      %s104 = sphi 0, %s103
      %s118 = sphi 0, %s104
      %s124 = sphi 0, %s126
      %s127 = sphi 0, %s124
      %s128 = sphi 0, %s127
      %s144 = sphi 0, %s128
      %s150 = sphi 0, %s152
      %s153 = sphi 0, %s150
      %s154 = sphi 0, %s153
      %s170 = sphi 0, %s154
      %s176 = sphi 0, %s178
      %s179 = sphi 0, %s176
      %s180 = sphi 0, %s179
      %s196 = sphi 0, %s180
    $region4: #{conv2d_block_forward.1} parent=1 // loop_header_branch
      %16 = sbr.rel (%p14) target = $region8
    $region5: #{conv2d_block_forward.1} parent=1 // loop_body
      %s18 = ssub.s32 %s13, 1
      %s19 = ssub.s32 %s13, 2
      %s20 = sadd.s32 %s13, 1
      %s21 = ssub.s32 %s13, %s20
      %p22 = scmp.eq.s32.totalorder %s21, 0
      %s24 = sadd.s32 %s23, 1
      %s25 = scalar_select %p22, %s23, %s24
      %p28 = pneg %p22
      %p29 = scmp.eq.s32.totalorder %s13, 1
      %p30 = por %p28, %p29
      %p31 = scmp.ne.s32.totalorder %s23, %s26
      %p32 = scmp.eq.s32.totalorder %s13, 0
      %p33 = por %p31, %p32
      %p34 = scmp.ne.s32.totalorder %s23, %s26
      %p35 = scmp.eq.s32.totalorder %s18, 1
      %p36 = por %p34, %p35
      %p37 = scmp.ne.s32.totalorder %s26, %s27
      %p38 = scmp.eq.s32.totalorder %s18, 0
      %p39 = por %p37, %p38
      %p40 = scmp.ne.s32.totalorder %s26, %s27
      %p41 = scmp.eq.s32.totalorder %s19, 1
      %p42 = por %p40, %p41
      %p44 = scmp.ne.s32.totalorder %s27, %s43
      %p45 = scmp.eq.s32.totalorder %s19, 0
      %p46 = por %p44, %p45
      %s47 = sadd.s32 %s13, 1
      %s48 = sadd.s32 %s20, 1
      %s49 = ssub.s32 %s47, %s48
      %p50 = scmp.eq.s32.totalorder %s49, 0
      %s52 = sadd.s32 %s51, 1
      %s53 = scalar_select %p50, %s51, %s52
      %p56 = pneg %p50
      %p57 = scmp.eq.s32.totalorder %s13, 1
      %p58 = por %p56, %p57
      %p59 = scmp.ne.s32.totalorder %s51, %s54
      %p60 = scmp.eq.s32.totalorder %s13, 0
      %p61 = por %p59, %p60
      %p62 = scmp.ne.s32.totalorder %s51, %s54
      %p63 = scmp.eq.s32.totalorder %s18, 1
      %p64 = por %p62, %p63
      %p65 = scmp.ne.s32.totalorder %s54, %s55
      %p66 = scmp.eq.s32.totalorder %s18, 0
      %p67 = por %p65, %p66
      %p68 = scmp.ne.s32.totalorder %s54, %s55
      %p69 = scmp.eq.s32.totalorder %s19, 1
      %p70 = por %p68, %p69
      %p72 = scmp.ne.s32.totalorder %s55, %s71
      %p73 = scmp.eq.s32.totalorder %s19, 0
      %p74 = por %p72, %p73
      %s75 = ssub.s32 %s13, %s20
      %p76 = scmp.eq.s32.totalorder %s75, 0
      %s78 = sadd.s32 %s77, 1
      %s79 = scalar_select %p76, %s77, %s78
      %p82 = pneg %p76
      %p83 = scmp.eq.s32.totalorder %s13, 1
      %p84 = por %p82, %p83
      %p85 = scmp.ne.s32.totalorder %s77, %s80
      %p86 = scmp.eq.s32.totalorder %s13, 0
      %p87 = por %p85, %p86
      %p88 = scmp.ne.s32.totalorder %s77, %s80
      %p89 = scmp.eq.s32.totalorder %s18, 1
      %p90 = por %p88, %p89
      %p91 = scmp.ne.s32.totalorder %s80, %s81
      %p92 = scmp.eq.s32.totalorder %s18, 0
      %p93 = por %p91, %p92
      %p94 = scmp.ne.s32.totalorder %s80, %s81
      %p95 = scmp.eq.s32.totalorder %s19, 1
      %p96 = por %p94, %p95
      %p98 = scmp.ne.s32.totalorder %s81, %s97
      %p99 = scmp.eq.s32.totalorder %s19, 0
      %p100 = por %p98, %p99
      %s102 = sadd.s32 %s101, 1
      %p105 = scmp.eq.s32.totalorder %s13, 1
      %p106 = scmp.ne.s32.totalorder %s101, %s103
      %p107 = scmp.eq.s32.totalorder %s13, 0
      %p108 = por %p106, %p107
      %p109 = scmp.ne.s32.totalorder %s101, %s103
      %p110 = scmp.eq.s32.totalorder %s18, 1
      %p111 = por %p109, %p110
      %p112 = scmp.ne.s32.totalorder %s103, %s104
      %p113 = scmp.eq.s32.totalorder %s18, 0
      %p114 = por %p112, %p113
      %p115 = scmp.ne.s32.totalorder %s103, %s104
      %p116 = scmp.eq.s32.totalorder %s19, 1
      %p117 = por %p115, %p116
      %p119 = scmp.ne.s32.totalorder %s104, %s118
      %p120 = scmp.eq.s32.totalorder %s19, 0
      %p121 = por %p119, %p120
      %s122 = ssub.s32 %s13, %s20
      %p123 = scmp.eq.s32.totalorder %s122, 0
      %s125 = sadd.s32 %s124, 1
      %s126 = scalar_select %p123, %s124, %s125
      %p129 = pneg %p123
      %p130 = scmp.eq.s32.totalorder %s13, 1
      %p131 = por %p129, %p130
      %p132 = scmp.ne.s32.totalorder %s124, %s127
      %p133 = scmp.eq.s32.totalorder %s13, 0
      %p134 = por %p132, %p133
      %p135 = scmp.ne.s32.totalorder %s124, %s127
      %p136 = scmp.eq.s32.totalorder %s18, 1
      %p137 = por %p135, %p136
      %p138 = scmp.ne.s32.totalorder %s127, %s128
      %p139 = scmp.eq.s32.totalorder %s18, 0
      %p140 = por %p138, %p139
      %p141 = scmp.ne.s32.totalorder %s127, %s128
      %p142 = scmp.eq.s32.totalorder %s19, 1
      %p143 = por %p141, %p142
      %p145 = scmp.ne.s32.totalorder %s128, %s144
      %p146 = scmp.eq.s32.totalorder %s19, 0
      %p147 = por %p145, %p146
      %s148 = ssub.s32 %s13, %s20
      %p149 = scmp.eq.s32.totalorder %s148, 0
      %s151 = sadd.s32 %s150, 1
      %s152 = scalar_select %p149, %s150, %s151
      %p155 = pneg %p149
      %p156 = scmp.eq.s32.totalorder %s13, 1
      %p157 = por %p155, %p156
      %p158 = scmp.ne.s32.totalorder %s150, %s153
      %p159 = scmp.eq.s32.totalorder %s13, 0
      %p160 = por %p158, %p159
      %p161 = scmp.ne.s32.totalorder %s150, %s153
      %p162 = scmp.eq.s32.totalorder %s18, 1
      %p163 = por %p161, %p162
      %p164 = scmp.ne.s32.totalorder %s153, %s154
      %p165 = scmp.eq.s32.totalorder %s18, 0
      %p166 = por %p164, %p165
      %p167 = scmp.ne.s32.totalorder %s153, %s154
      %p168 = scmp.eq.s32.totalorder %s19, 1
      %p169 = por %p167, %p168
      %p171 = scmp.ne.s32.totalorder %s154, %s170
      %p172 = scmp.eq.s32.totalorder %s19, 0
      %p173 = por %p171, %p172
      %s174 = ssub.s32 %s13, %s20
      %p175 = scmp.eq.s32.totalorder %s174, 0
      %s177 = sadd.s32 %s176, 1
      %s178 = scalar_select %p175, %s176, %s177
      %p181 = pneg %p175
      %p182 = scmp.eq.s32.totalorder %s13, 1
      %p183 = por %p181, %p182
      %p184 = scmp.ne.s32.totalorder %s176, %s179
      %p185 = scmp.eq.s32.totalorder %s13, 0
      %p186 = por %p184, %p185
      %p187 = scmp.ne.s32.totalorder %s176, %s179
      %p188 = scmp.eq.s32.totalorder %s18, 1
      %p189 = por %p187, %p188
      %p190 = scmp.ne.s32.totalorder %s179, %s180
      %p191 = scmp.eq.s32.totalorder %s18, 0
      %p192 = por %p190, %p191
      %p193 = scmp.ne.s32.totalorder %s179, %s180
      %p194 = scmp.eq.s32.totalorder %s19, 1
      %p195 = por %p193, %p194
      %p197 = scmp.ne.s32.totalorder %s180, %s196
      %p198 = scmp.eq.s32.totalorder %s19, 0
      %p199 = por %p197, %p198
      %p200 = scmp.le.s32.totalorder 1, %s13
      %p201 = scmp.lt.s32.totalorder %s13, 3
      %p202 = pnand %p200, %p201
      %p203 = pneg %p202
      // Predicated region
      $region9: #{conv2d_block_forward.1} parent=5 // pred_check
        _
      $region10: #{conv2d_block_forward.1} parent=5 // pred_check_branch
        %205 = sbr.rel (%p202) target = $region12
      $region11: #{conv2d_block_forward.1} parent=5 // pred_region
        %s206 = ssub.s32 %s13, 1
        // Predicated region
        $region13: #{conv2d_block_forward.1} parent=11 // pred_check
          %p207 = pneg %p114
        $region14: #{conv2d_block_forward.1} parent=11 // pred_check_branch
          %209 = sbr.rel (%p207) target = $region16
        $region15: #{conv2d_block_forward.1} parent=11 // pred_region
          _
        $region16: #{conv2d_block_forward.1} parent=11 // pred_fallthru
          _
      $region12: #{conv2d_block_forward.1} parent=5 // pred_fallthru
        _
      %p210 = scmp.lt.s32.totalorder %s13, 2
      // Predicated region
      $region17: #{conv2d_block_forward.1} parent=5 // pred_check
        %p211 = pneg %p210
      $region18: #{conv2d_block_forward.1} parent=5 // pred_check_branch
        %213 = sbr.rel (%p211) target = $region20
      $region19: #{conv2d_block_forward.1} parent=5 // pred_region
        // Predicated region
        $region21: #{conv2d_block_forward.1} parent=19 // pred_check
          %p214 = pneg %p33
        $region22: #{conv2d_block_forward.1} parent=19 // pred_check_branch
          %216 = sbr.rel (%p214) target = $region24
        $region23: #{conv2d_block_forward.1} parent=19 // pred_region
          %s217 = sand.u32 %s23, 1
          %s218 = sand.u32 %s23, 1
          %s219 = smul.addr %s218, 16
          %s220 = scalar_lea.vmem [#allocation2], %s219
          %s221 = smul.addr %s13, 8
          %s222 = scalar_lea.vmem %s0, %s221
          // Predicated region
          $region25: #{conv2d_block_forward.1} parent=23 // pred_check
            _
          $region26: #{conv2d_block_forward.1} parent=23 // pred_check_branch
            %224 = sbr.rel (0) target = $region28
          $region27: #{conv2d_block_forward.1} parent=23 // pred_region
            // Predicated region
            $region29: #{conv2d_block_forward.1} parent=27 // pred_check
              _
            $region30: #{conv2d_block_forward.1} parent=27 // pred_check_branch
              %226 = sbr.rel (0) target = $region32
            $region31: #{conv2d_block_forward.1} parent=27 // pred_region
              // Predicated region
              $region44: #{conv2d_block_forward.1} parent=31 // pred_check
                _
              $region45: #{conv2d_block_forward.1} parent=31 // pred_check_branch
                %243 = sbr.rel (0) target = $region47
              $region46: #{conv2d_block_forward.1} parent=31 // pred_region
                loop: start=0, step=1, limit=1
                $region48: #{conv2d_block_forward.1} parent=46 // loop_pre_header
                  _
                $region49: #{conv2d_block_forward.1} parent=46 // loop_header
                  %s245 = sphi 0, %s249
                  %p246 = scmp.ge.s32.totalorder %s245, 1
                  %s250 = sphi %s222, %s222
                  %s251 = sphi %s220, %s220
                $region50: #{conv2d_block_forward.1} parent=46 // loop_header_branch
                  %248 = sbr.rel (%p246) target = $region54
                $region51: #{conv2d_block_forward.1} parent=46 // loop_body
                  %v252 = vld [vmem:[%s250] sm:$0xff]
                  %253 = vst [vmem:[%s251] sm:$0xff] %v252
                  %v254 = vld [vmem:[%s250 + $0x18] sm:$0xff]
                  %255 = vst [vmem:[%s251 + $0x8] sm:$0xff] %v254
                $region52: #{conv2d_block_forward.1} parent=46 // loop_footer
                  %s249 = sadd.s32 1, %s245
                $region53: #{conv2d_block_forward.1} parent=46 // loop_footer_branch
                  %244 = sbr.rel target = $region49
                $region54: #{conv2d_block_forward.1} parent=46 // loop_exit
                  _
              $region47: #{conv2d_block_forward.1} parent=31 // pred_fallthru
                _
              // Predicated region
              $region55: #{conv2d_block_forward.1} parent=31 // pred_check
                _
              $region56: #{conv2d_block_forward.1} parent=31 // pred_check_branch
                %257 = sbr.rel target = $region58
              $region57: #{conv2d_block_forward.1} parent=31 // pred_region
                _
              $region58: #{conv2d_block_forward.1} parent=31 // pred_fallthru
                _
            $region32: #{conv2d_block_forward.1} parent=27 // pred_fallthru
              _
            // Predicated region
            $region33: #{conv2d_block_forward.1} parent=27 // pred_check
              _
            $region34: #{conv2d_block_forward.1} parent=27 // pred_check_branch
              %228 = sbr.rel target = $region36
            $region35: #{conv2d_block_forward.1} parent=27 // pred_region
              loop: start=0, step=1, limit=1
              $region37: #{conv2d_block_forward.1} parent=35 // loop_pre_header
                _
              $region38: #{conv2d_block_forward.1} parent=35 // loop_header
                %s231 = sphi 0, %s235
                %p232 = scmp.ge.s32.totalorder %s231, 1
                %s236 = sphi %s222, %s222
                %s237 = sphi %s220, %s220
              $region39: #{conv2d_block_forward.1} parent=35 // loop_header_branch
                %234 = sbr.rel (%p232) target = $region43
              $region40: #{conv2d_block_forward.1} parent=35 // loop_body
                %v238 = vld [vmem:[%s236] sm:$0xff]
                %239 = vst [vmem:[%s237] sm:$0xff] %v238
                %v240 = vld [vmem:[%s236 + $0x18] sm:$0xff]
                %241 = vst [vmem:[%s237 + $0x8] sm:$0xff] %v240
              $region41: #{conv2d_block_forward.1} parent=35 // loop_footer
                %s235 = sadd.s32 1, %s231
              $region42: #{conv2d_block_forward.1} parent=35 // loop_footer_branch
                %230 = sbr.rel target = $region38
              $region43: #{conv2d_block_forward.1} parent=35 // loop_exit
                _
            $region36: #{conv2d_block_forward.1} parent=27 // pred_fallthru
              _
          $region28: #{conv2d_block_forward.1} parent=23 // pred_fallthru
            _
          %258 = vnop
        $region24: #{conv2d_block_forward.1} parent=19 // pred_fallthru
          _
        // Predicated region
        $region59: #{conv2d_block_forward.1} parent=19 // pred_check
          %p259 = pneg %p61
        $region60: #{conv2d_block_forward.1} parent=19 // pred_check_branch
          %261 = sbr.rel (%p259) target = $region62
        $region61: #{conv2d_block_forward.1} parent=19 // pred_region
          %s262 = sand.u32 %s51, 1
          %s263 = sand.u32 %s51, 1
          %s264 = smul.addr %s263, 16
          %s265 = scalar_lea.vmem [#allocation3], %s264
          %s266 = sadd.s32 %s13, 1
          %s267 = smul.addr %s266, 8
          %s268 = scalar_lea.vmem %s1, %s267
          // Predicated region
          $region63: #{conv2d_block_forward.1} parent=61 // pred_check
            _
          $region64: #{conv2d_block_forward.1} parent=61 // pred_check_branch
            %270 = sbr.rel (0) target = $region66
          $region65: #{conv2d_block_forward.1} parent=61 // pred_region
            // Predicated region
            $region67: #{conv2d_block_forward.1} parent=65 // pred_check
              _
            $region68: #{conv2d_block_forward.1} parent=65 // pred_check_branch
              %272 = sbr.rel (0) target = $region70
            $region69: #{conv2d_block_forward.1} parent=65 // pred_region
              // Predicated region
              $region82: #{conv2d_block_forward.1} parent=69 // pred_check
                _
              $region83: #{conv2d_block_forward.1} parent=69 // pred_check_branch
                %289 = sbr.rel (0) target = $region85
              $region84: #{conv2d_block_forward.1} parent=69 // pred_region
                loop: start=0, step=1, limit=1
                $region86: #{conv2d_block_forward.1} parent=84 // loop_pre_header
                  _
                $region87: #{conv2d_block_forward.1} parent=84 // loop_header
                  %s291 = sphi 0, %s295
                  %p292 = scmp.ge.s32.totalorder %s291, 1
                  %s296 = sphi %s268, %s268
                  %s297 = sphi %s265, %s265
                $region88: #{conv2d_block_forward.1} parent=84 // loop_header_branch
                  %294 = sbr.rel (%p292) target = $region92
                $region89: #{conv2d_block_forward.1} parent=84 // loop_body
                  %v298 = vld [vmem:[%s296] sm:$0xff]
                  %299 = vst [vmem:[%s297] sm:$0xff] %v298
                  %v300 = vld [vmem:[%s296 + $0x18] sm:$0xff]
                  %301 = vst [vmem:[%s297 + $0x8] sm:$0xff] %v300
                $region90: #{conv2d_block_forward.1} parent=84 // loop_footer
                  %s295 = sadd.s32 1, %s291
                $region91: #{conv2d_block_forward.1} parent=84 // loop_footer_branch
                  %290 = sbr.rel target = $region87
                $region92: #{conv2d_block_forward.1} parent=84 // loop_exit
                  _
              $region85: #{conv2d_block_forward.1} parent=69 // pred_fallthru
                _
              // Predicated region
              $region93: #{conv2d_block_forward.1} parent=69 // pred_check
                _
              $region94: #{conv2d_block_forward.1} parent=69 // pred_check_branch
                %303 = sbr.rel target = $region96
              $region95: #{conv2d_block_forward.1} parent=69 // pred_region
                _
              $region96: #{conv2d_block_forward.1} parent=69 // pred_fallthru
                _
            $region70: #{conv2d_block_forward.1} parent=65 // pred_fallthru
              _
            // Predicated region
            $region71: #{conv2d_block_forward.1} parent=65 // pred_check
              _
            $region72: #{conv2d_block_forward.1} parent=65 // pred_check_branch
              %274 = sbr.rel target = $region74
            $region73: #{conv2d_block_forward.1} parent=65 // pred_region
              loop: start=0, step=1, limit=1
              $region75: #{conv2d_block_forward.1} parent=73 // loop_pre_header
                _
              $region76: #{conv2d_block_forward.1} parent=73 // loop_header
                %s277 = sphi 0, %s281
                %p278 = scmp.ge.s32.totalorder %s277, 1
                %s282 = sphi %s268, %s268
                %s283 = sphi %s265, %s265
              $region77: #{conv2d_block_forward.1} parent=73 // loop_header_branch
                %280 = sbr.rel (%p278) target = $region81
              $region78: #{conv2d_block_forward.1} parent=73 // loop_body
                %v284 = vld [vmem:[%s282] sm:$0xff]
                %285 = vst [vmem:[%s283] sm:$0xff] %v284
                %v286 = vld [vmem:[%s282 + $0x18] sm:$0xff]
                %287 = vst [vmem:[%s283 + $0x8] sm:$0xff] %v286
              $region79: #{conv2d_block_forward.1} parent=73 // loop_footer
                %s281 = sadd.s32 1, %s277
              $region80: #{conv2d_block_forward.1} parent=73 // loop_footer_branch
                %276 = sbr.rel target = $region76
              $region81: #{conv2d_block_forward.1} parent=73 // loop_exit
                _
            $region74: #{conv2d_block_forward.1} parent=65 // pred_fallthru
              _
          $region66: #{conv2d_block_forward.1} parent=61 // pred_fallthru
            _
          %304 = vnop
        $region62: #{conv2d_block_forward.1} parent=19 // pred_fallthru
          _
        // Predicated region
        $region97: #{conv2d_block_forward.1} parent=19 // pred_check
          %p305 = pneg %p87
        $region98: #{conv2d_block_forward.1} parent=19 // pred_check_branch
          %307 = sbr.rel (%p305) target = $region100
        $region99: #{conv2d_block_forward.1} parent=19 // pred_region
          %p308 = scmp.lt.s32.totalorder %s13, 1
          %s309 = scalar_select %p308, %s13, 1
          %s310 = scalar_lea.vmem %s2, %s309
        $region100: #{conv2d_block_forward.1} parent=19 // pred_fallthru
          _
      $region20: #{conv2d_block_forward.1} parent=5 // pred_fallthru
        _
      %p311 = scmp.le.s32.totalorder 1, %s13
      %p312 = scmp.lt.s32.totalorder %s13, 3
      %p313 = pnand %p311, %p312
      %p314 = pneg %p313
      // Predicated region
      $region101: #{conv2d_block_forward.1} parent=5 // pred_check
        _
      $region102: #{conv2d_block_forward.1} parent=5 // pred_check_branch
        %316 = sbr.rel (%p313) target = $region104
      $region103: #{conv2d_block_forward.1} parent=5 // pred_region
        %s317 = ssub.s32 %s13, 1
        %s318 = sand.u32 %s26, 1
        %s319 = sand.u32 %s26, 1
        %s320 = smul.addr %s319, 16
        %s321 = scalar_lea.vmem [#allocation2], %s320
        // Predicated region
        $region105: #{conv2d_block_forward.1} parent=103 // pred_check
          %p322 = pneg %p39
        $region106: #{conv2d_block_forward.1} parent=103 // pred_check_branch
          %324 = sbr.rel (%p322) target = $region108
        $region107: #{conv2d_block_forward.1} parent=103 // pred_region
          _
        $region108: #{conv2d_block_forward.1} parent=103 // pred_fallthru
          _
        %s325 = sand.u32 %s54, 1
        %s326 = sand.u32 %s54, 1
        %s327 = smul.addr %s326, 16
        %s328 = scalar_lea.vmem [#allocation3], %s327
        // Predicated region
        $region109: #{conv2d_block_forward.1} parent=103 // pred_check
          %p329 = pneg %p67
        $region110: #{conv2d_block_forward.1} parent=103 // pred_check_branch
          %331 = sbr.rel (%p329) target = $region112
        $region111: #{conv2d_block_forward.1} parent=103 // pred_region
          _
        $region112: #{conv2d_block_forward.1} parent=103 // pred_fallthru
          _
        %s332 = sand.u32 %s26, 1
        %s333 = sand.u32 %s26, 1
        %s334 = smul.addr %s333, 16
        %s335 = scalar_lea.vmem [#allocation2], %s334
        %p336 = pneg %p39
        %p337 = pneg %p36
        %s338 = sand.u32 %s54, 1
        %s339 = sand.u32 %s54, 1
        %s340 = smul.addr %s339, 16
        %s341 = scalar_lea.vmem [#allocation3], %s340
        %p342 = pneg %p67
        %p343 = pneg %p64
        %p344 = scmp.lt.s32.totalorder %s18, 1
        %s345 = scalar_select %p344, %s18, 1
        %s346 = scalar_lea.vmem %s2, %s345
        %p347 = pneg %p93
        %p348 = pneg %p90
        %p349 = pneg %p114
        %p350 = pneg %p111
        %p351 = pneg %p140
        %p352 = pneg %p137
        %p353 = scmp.lt.s32.totalorder %s18, 1
        %s354 = scalar_select %p353, %s18, 1
        %s355 = smul.addr %s354, 8
        %s356 = scalar_lea.vmem %s4, %s355
        %p357 = pneg %p166
        %p358 = pneg %p163
        %p359 = scmp.lt.s32.totalorder %s18, 1
        %s360 = scalar_select %p359, %s18, 1
        %s361 = smul.addr %s360, 8
        %s362 = scalar_lea.vmem %s5, %s361
        %p363 = pneg %p192
        %p364 = pneg %p189
        %p365 = scmp.lt.s32.totalorder %s18, 1
        %s366 = scalar_select %p365, %s18, 1
        %s367 = smul.addr %s366, 8
        %s368 = scalar_lea.vmem %s6, %s367
        %s369 = sadd.s32 %s18, 1
        %p370 = scmp.lt.s32.totalorder %s18, 1
        %s371 = scalar_select %p370, %s18, 1
        %s372 = scalar_lea.vmem %s2, %s371
        %p373 = scmp.lt.s32.totalorder %s18, 1
        %s374 = scalar_select %p373, %s18, 1
        %s375 = smul.addr %s374, 8
        %s376 = scalar_lea.vmem %s4, %s375
        %p377 = scmp.lt.s32.totalorder %s18, 1
        %s378 = scalar_select %p377, %s18, 1
        %s379 = smul.addr %s378, 8
        %s380 = scalar_lea.vmem %s5, %s379
        %p381 = scmp.lt.s32.totalorder %s18, 1
        %s382 = scalar_select %p381, %s18, 1
        %s383 = smul.addr %s382, 8
        %s384 = scalar_lea.vmem %s6, %s383
        %v385 = vld [vmem:[%s321] sm:$0xff]
        %v386 = vld [vmem:[%s321 + $0x8] sm:$0xff]
        %v387 = vld [vmem:[%s328] sm:$0xff]
        %v388 = vld [vmem:[%s328 + $0x8] sm:$0xff]
        %vm389 = vcmp.gt.f32.partialorder %v385, 0.0
        %vm390 = vcmp.gt.f32.partialorder %v387, 0.0
        %vm391 = vcmp.gt.f32.partialorder %v386, 0.0
        %vm392 = vcmp.gt.f32.partialorder %v388, 0.0
        %v393 = vmul.f32 %v385, 0.2
        %v394 = vmul.f32 %v387, 0.2
        %v395 = vmul.f32 %v386, 0.2
        %v396 = vmul.f32 %v388, 0.2
        %v397 = vsel %vm389, %v385, %v393
        %v398 = vsel %vm390, %v387, %v394
        %v399 = vsel %vm391, %v386, %v395
        %v400 = vsel %vm392, %v388, %v396
        %v401 = vld [vmem:[%s3] sm:$0xff]
        %s402 = scalar_lea.vmem %s3, 8
        %v403 = vld [vmem:[%s402] sm:$0xff]
        %408 = vrot.lane.b32.xlu0 %v397, 127
        %v409 = vpop.permute.xlu0 %408
        %410 = vrot.lane.b32.xlu0 %v398, 127
        %v411 = vpop.permute.xlu0 %410
        %412 = vrot.lane.b32.xlu0 %v399, 127
        %v413 = vpop.permute.xlu0 %412
        %414 = vrot.lane.b32.xlu0 %v400, 127
        %v415 = vpop.permute.xlu0 %414
        %vm416 = vcmask 1039360
        %v417 = vsel %vm416, %v409, %v411
        %v418 = vsel %vm416, %v413, %v415
        %vm421 = vcmask 130048
        %v423 = vsel %vm421, %v403, 0
        %425 = vmatprep.subr.mxu0 0.0
        %426 = vmatpush1.msra.mxu0 %v417
        %427 = vmatprep.subr.mxu0 0.0
        %428 = vmatpush1.msra.mxu0 %v418
        %429 = vmatprep.subr.mxu0 0.0
        %430 = vmatpush1.msra.mxu0 0.0
        %431 = vmatprep.subr.mxu0 0.0
        %432 = vmatpush1.msra.mxu0 0.0
        %433 = vmatprep.subr.mxu0 0.0
        %434 = vmatpush1.msra.mxu0 0.0
        %435 = vmatprep.subr.mxu0 0.0
        %436 = vmatpush1.msra.mxu0 0.0
        %437 = vmatprep.subr.mxu0 0.0
        %438 = vmatpush1.msra.mxu0 0.0
        %439 = vmatprep.subr.mxu0 0.0
        %440 = vmatpush1.msra.mxu0 0.0
        %441 = vmatprep.subr.mxu0 0.0
        %442 = vmatpush1.msra.mxu0 0.0
        %443 = vmatprep.subr.mxu0 0.0
        %444 = vmatpush1.msra.mxu0 0.0
        %445 = vmatprep.subr.mxu0 0.0
        %446 = vmatpush1.msra.mxu0 0.0
        %447 = vmatprep.subr.mxu0 0.0
        %448 = vmatpush1.msra.mxu0 0.0
        %449 = vmatprep.subr.mxu0 0.0
        %450 = vmatpush1.msra.mxu0 0.0
        %451 = vmatprep.subr.mxu0 0.0
        %452 = vmatpush1.msra.mxu0 0.0
        %453 = vmatprep.subr.mxu0 0.0
        %454 = vmatpush1.msra.mxu0 0.0
        %455 = vmatprep.subr.mxu0 0.0
        %456 = vmatpush1.msra.mxu0 0.0
        %457 = vmatprep.subr.mxu0 0.0
        %458 = vmatpush1.msra.mxu0 0.0
        %459 = vmatprep.subr.mxu0 0.0
        %460 = vmatpush1.msra.mxu0 0.0
        %461 = vmatprep.subr.mxu0 0.0
        %462 = vmatpush1.msra.mxu0 0.0
        %463 = vmatprep.subr.mxu0 0.0
        %464 = vmatpush1.msra.mxu0 0.0
        %465 = vmatprep.subr.mxu0 0.0
        %466 = vmatpush1.msra.mxu0 0.0
        %467 = vmatprep.subr.mxu0 0.0
        %468 = vmatpush1.msra.mxu0 0.0
        %469 = vmatprep.subr.mxu0 0.0
        %470 = vmatpush1.msra.mxu0 0.0
        %471 = vmatprep.subr.mxu0 0.0
        %472 = vmatpush1.msra.mxu0 0.0
        %473 = vmatprep.subr.mxu0 0.0
        %474 = vmatpush1.msra.mxu0 0.0
        %475 = vmatprep.subr.mxu0 0.0
        %476 = vmatpush1.msra.mxu0 0.0
        %477 = vmatprep.subr.mxu0 0.0
        %478 = vmatpush1.msra.mxu0 0.0
        %479 = vmatprep.subr.mxu0 0.0
        %480 = vmatpush1.msra.mxu0 0.0
        %481 = vmatprep.subr.mxu0 0.0
        %482 = vmatpush1.msra.mxu0 0.0
        %483 = vmatprep.subr.mxu0 0.0
        %484 = vmatpush1.msra.mxu0 0.0
        %485 = vmatprep.subr.mxu0 0.0
        %486 = vmatpush1.msra.mxu0 0.0
        %487 = vmatprep.subr.mxu0 0.0
        %488 = vmatpush1.msra.mxu0 0.0
        %489 = vmatprep.mubr.f32.mxu0 0.0
        %490 = vmatmul.mubr.f32.gmra.mrb[0].mxu0 %v423
        %v491 = vpop.f32.mrb[0].mxu0
        %v492 = vadd.f32 0.0, %v491
        %v493 = vpop.f32.mrb[0].mxu0
        %494 = vdwg.mxu0
        %v496 = vsel %vm421, %v401, 0
        %498 = vmatprep.subr.mxu0 0.0
        %499 = vmatpush1.msra.mxu0 %v397
        %500 = vmatprep.subr.mxu0 0.0
        %501 = vmatpush1.msra.mxu0 %v399
        %502 = vmatprep.subr.mxu0 0.0
        %503 = vmatpush1.msra.mxu0 0.0
        %504 = vmatprep.subr.mxu0 0.0
        %505 = vmatpush1.msra.mxu0 0.0
        %506 = vmatprep.subr.mxu0 0.0
        %507 = vmatpush1.msra.mxu0 0.0
        %508 = vmatprep.subr.mxu0 0.0
        %509 = vmatpush1.msra.mxu0 0.0
        %510 = vmatprep.subr.mxu0 0.0
        %511 = vmatpush1.msra.mxu0 0.0
        %512 = vmatprep.subr.mxu0 0.0
        %513 = vmatpush1.msra.mxu0 0.0
        %514 = vmatprep.subr.mxu0 0.0
        %515 = vmatpush1.msra.mxu0 0.0
        %516 = vmatprep.subr.mxu0 0.0
        %517 = vmatpush1.msra.mxu0 0.0
        %518 = vmatprep.subr.mxu0 0.0
        %519 = vmatpush1.msra.mxu0 0.0
        %520 = vmatprep.subr.mxu0 0.0
        %521 = vmatpush1.msra.mxu0 0.0
        %522 = vmatprep.subr.mxu0 0.0
        %523 = vmatpush1.msra.mxu0 0.0
        %524 = vmatprep.subr.mxu0 0.0
        %525 = vmatpush1.msra.mxu0 0.0
        %526 = vmatprep.subr.mxu0 0.0
        %527 = vmatpush1.msra.mxu0 0.0
        %528 = vmatprep.subr.mxu0 0.0
        %529 = vmatpush1.msra.mxu0 0.0
        %530 = vmatprep.subr.mxu0 0.0
        %531 = vmatpush1.msra.mxu0 0.0
        %532 = vmatprep.subr.mxu0 0.0
        %533 = vmatpush1.msra.mxu0 0.0
        %534 = vmatprep.subr.mxu0 0.0
        %535 = vmatpush1.msra.mxu0 0.0
        %536 = vmatprep.subr.mxu0 0.0
        %537 = vmatpush1.msra.mxu0 0.0
        %538 = vmatprep.subr.mxu0 0.0
        %539 = vmatpush1.msra.mxu0 0.0
        %540 = vmatprep.subr.mxu0 0.0
        %541 = vmatpush1.msra.mxu0 0.0
        %542 = vmatprep.subr.mxu0 0.0
        %543 = vmatpush1.msra.mxu0 0.0
        %544 = vmatprep.subr.mxu0 0.0
        %545 = vmatpush1.msra.mxu0 0.0
        %546 = vmatprep.subr.mxu0 0.0
        %547 = vmatpush1.msra.mxu0 0.0
        %548 = vmatprep.subr.mxu0 0.0
        %549 = vmatpush1.msra.mxu0 0.0
        %550 = vmatprep.subr.mxu0 0.0
        %551 = vmatpush1.msra.mxu0 0.0
        %552 = vmatprep.subr.mxu0 0.0
        %553 = vmatpush1.msra.mxu0 0.0
        %554 = vmatprep.subr.mxu0 0.0
        %555 = vmatpush1.msra.mxu0 0.0
        %556 = vmatprep.subr.mxu0 0.0
        %557 = vmatpush1.msra.mxu0 0.0
        %558 = vmatprep.subr.mxu0 0.0
        %559 = vmatpush1.msra.mxu0 0.0
        %560 = vmatprep.subr.mxu0 0.0
        %561 = vmatpush1.msra.mxu0 0.0
        %562 = vmatprep.mubr.f32.mxu0 0.0
        %563 = vmatmul.mubr.f32.gmra.mrb[0].mxu0 %v496
        %v564 = vpop.f32.mrb[0].mxu0
        %v565 = vadd.f32 %v492, %v564
        %v566 = vpop.f32.mrb[0].mxu0
        %567 = vdwg.mxu0
        %s568 = scalar_lea.vmem %s3, 16
        %v569 = vld [vmem:[%s568] sm:$0xff]
        %570 = vrot.lane.b32.xlu0 %v397, 119
        %v571 = vpop.permute.xlu0 %570
        %572 = vrot.lane.b32.xlu0 %v398, 119
        %v573 = vpop.permute.xlu0 %572
        %574 = vrot.lane.b32.xlu0 %v399, 119
        %v575 = vpop.permute.xlu0 %574
        %576 = vrot.lane.b32.xlu0 %v400, 119
        %v577 = vpop.permute.xlu0 %576
        %vm578 = vcmask 973824
        %v579 = vsel %vm578, %v571, %v573
        %v580 = vsel %vm578, %v575, %v577
        %v584 = vsel %vm421, %v569, 0
        %586 = vmatprep.subr.mxu0 0.0
        %587 = vmatpush1.msra.mxu0 %v579
        %588 = vmatprep.subr.mxu0 0.0
        %589 = vmatpush1.msra.mxu0 %v580
        %590 = vmatprep.subr.mxu0 0.0
        %591 = vmatpush1.msra.mxu0 0.0
        %592 = vmatprep.subr.mxu0 0.0
        %593 = vmatpush1.msra.mxu0 0.0
        %594 = vmatprep.subr.mxu0 0.0
        %595 = vmatpush1.msra.mxu0 0.0
        %596 = vmatprep.subr.mxu0 0.0
        %597 = vmatpush1.msra.mxu0 0.0
        %598 = vmatprep.subr.mxu0 0.0
        %599 = vmatpush1.msra.mxu0 0.0
        %600 = vmatprep.subr.mxu0 0.0
        %601 = vmatpush1.msra.mxu0 0.0
        %602 = vmatprep.subr.mxu0 0.0
        %603 = vmatpush1.msra.mxu0 0.0
        %604 = vmatprep.subr.mxu0 0.0
        %605 = vmatpush1.msra.mxu0 0.0
        %606 = vmatprep.subr.mxu0 0.0
        %607 = vmatpush1.msra.mxu0 0.0
        %608 = vmatprep.subr.mxu0 0.0
        %609 = vmatpush1.msra.mxu0 0.0
        %610 = vmatprep.subr.mxu0 0.0
        %611 = vmatpush1.msra.mxu0 0.0
        %612 = vmatprep.subr.mxu0 0.0
        %613 = vmatpush1.msra.mxu0 0.0
        %614 = vmatprep.subr.mxu0 0.0
        %615 = vmatpush1.msra.mxu0 0.0
        %616 = vmatprep.subr.mxu0 0.0
        %617 = vmatpush1.msra.mxu0 0.0
        %618 = vmatprep.subr.mxu0 0.0
        %619 = vmatpush1.msra.mxu0 0.0
        %620 = vmatprep.subr.mxu0 0.0
        %621 = vmatpush1.msra.mxu0 0.0
        %622 = vmatprep.subr.mxu0 0.0
        %623 = vmatpush1.msra.mxu0 0.0
        %624 = vmatprep.subr.mxu0 0.0
        %625 = vmatpush1.msra.mxu0 0.0
        %626 = vmatprep.subr.mxu0 0.0
        %627 = vmatpush1.msra.mxu0 0.0
        %628 = vmatprep.subr.mxu0 0.0
        %629 = vmatpush1.msra.mxu0 0.0
        %630 = vmatprep.subr.mxu0 0.0
        %631 = vmatpush1.msra.mxu0 0.0
        %632 = vmatprep.subr.mxu0 0.0
        %633 = vmatpush1.msra.mxu0 0.0
        %634 = vmatprep.subr.mxu0 0.0
        %635 = vmatpush1.msra.mxu0 0.0
        %636 = vmatprep.subr.mxu0 0.0
        %637 = vmatpush1.msra.mxu0 0.0
        %638 = vmatprep.subr.mxu0 0.0
        %639 = vmatpush1.msra.mxu0 0.0
        %640 = vmatprep.subr.mxu0 0.0
        %641 = vmatpush1.msra.mxu0 0.0
        %642 = vmatprep.subr.mxu0 0.0
        %643 = vmatpush1.msra.mxu0 0.0
        %644 = vmatprep.subr.mxu0 0.0
        %645 = vmatpush1.msra.mxu0 0.0
        %646 = vmatprep.subr.mxu0 0.0
        %647 = vmatpush1.msra.mxu0 0.0
        %648 = vmatprep.subr.mxu0 0.0
        %649 = vmatpush1.msra.mxu0 0.0
        %650 = vmatprep.mubr.f32.mxu0 0.0
        %651 = vmatmul.mubr.f32.gmra.mrb[0].mxu0 %v584
        %v652 = vpop.f32.mrb[0].mxu0
        %v653 = vadd.f32 0.0, %v652
        %v654 = vpop.f32.mrb[0].mxu0
        %655 = vdwg.mxu0
        %v656 = vadd.f32 %v565, %v653
        %s657 = scalar_lea.vmem %s3, 24
        %v658 = vld [vmem:[%s657] sm:$0xff]
        %659 = vrot.lane.b32.xlu0 %v397, 118
        %v660 = vpop.permute.xlu0 %659
        %661 = vrot.lane.b32.xlu0 %v398, 118
        %v662 = vpop.permute.xlu0 %661
        %663 = vrot.lane.b32.xlu0 %v399, 118
        %v664 = vpop.permute.xlu0 %663
        %665 = vrot.lane.b32.xlu0 %v400, 118
        %v666 = vpop.permute.xlu0 %665
        %vm667 = vcmask 965632
        %v668 = vsel %vm667, %v660, %v662
        %v669 = vsel %vm667, %v664, %v666
        %v673 = vsel %vm421, %v658, 0
        %675 = vmatprep.subr.mxu0 0.0
        %676 = vmatpush1.msra.mxu0 %v668
        %677 = vmatprep.subr.mxu0 0.0
        %678 = vmatpush1.msra.mxu0 %v669
        %679 = vmatprep.subr.mxu0 0.0
        %680 = vmatpush1.msra.mxu0 0.0
        %681 = vmatprep.subr.mxu0 0.0
        %682 = vmatpush1.msra.mxu0 0.0
        %683 = vmatprep.subr.mxu0 0.0
        %684 = vmatpush1.msra.mxu0 0.0
        %685 = vmatprep.subr.mxu0 0.0
        %686 = vmatpush1.msra.mxu0 0.0
        %687 = vmatprep.subr.mxu0 0.0
        %688 = vmatpush1.msra.mxu0 0.0
        %689 = vmatprep.subr.mxu0 0.0
        %690 = vmatpush1.msra.mxu0 0.0
        %691 = vmatprep.subr.mxu0 0.0
        %692 = vmatpush1.msra.mxu0 0.0
        %693 = vmatprep.subr.mxu0 0.0
        %694 = vmatpush1.msra.mxu0 0.0
        %695 = vmatprep.subr.mxu0 0.0
        %696 = vmatpush1.msra.mxu0 0.0
        %697 = vmatprep.subr.mxu0 0.0
        %698 = vmatpush1.msra.mxu0 0.0
        %699 = vmatprep.subr.mxu0 0.0
        %700 = vmatpush1.msra.mxu0 0.0
        %701 = vmatprep.subr.mxu0 0.0
        %702 = vmatpush1.msra.mxu0 0.0
        %703 = vmatprep.subr.mxu0 0.0
        %704 = vmatpush1.msra.mxu0 0.0
        %705 = vmatprep.subr.mxu0 0.0
        %706 = vmatpush1.msra.mxu0 0.0
        %707 = vmatprep.subr.mxu0 0.0
        %708 = vmatpush1.msra.mxu0 0.0
        %709 = vmatprep.subr.mxu0 0.0
        %710 = vmatpush1.msra.mxu0 0.0
        %711 = vmatprep.subr.mxu0 0.0
        %712 = vmatpush1.msra.mxu0 0.0
        %713 = vmatprep.subr.mxu0 0.0
        %714 = vmatpush1.msra.mxu0 0.0
        %715 = vmatprep.subr.mxu0 0.0
        %716 = vmatpush1.msra.mxu0 0.0
        %717 = vmatprep.subr.mxu0 0.0
        %718 = vmatpush1.msra.mxu0 0.0
        %719 = vmatprep.subr.mxu0 0.0
        %720 = vmatpush1.msra.mxu0 0.0
        %721 = vmatprep.subr.mxu0 0.0
        %722 = vmatpush1.msra.mxu0 0.0
        %723 = vmatprep.subr.mxu0 0.0
        %724 = vmatpush1.msra.mxu0 0.0
        %725 = vmatprep.subr.mxu0 0.0
        %726 = vmatpush1.msra.mxu0 0.0
        %727 = vmatprep.subr.mxu0 0.0
        %728 = vmatpush1.msra.mxu0 0.0
        %729 = vmatprep.subr.mxu0 0.0
        %730 = vmatpush1.msra.mxu0 0.0
        %731 = vmatprep.subr.mxu0 0.0
        %732 = vmatpush1.msra.mxu0 0.0
        %733 = vmatprep.subr.mxu0 0.0
        %734 = vmatpush1.msra.mxu0 0.0
        %735 = vmatprep.subr.mxu0 0.0
        %736 = vmatpush1.msra.mxu0 0.0
        %737 = vmatprep.subr.mxu0 0.0
        %738 = vmatpush1.msra.mxu0 0.0
        %739 = vmatprep.mubr.f32.mxu0 0.0
        %740 = vmatmul.mubr.f32.gmra.mrb[0].mxu0 %v673
        %v741 = vpop.f32.mrb[0].mxu0
        %v742 = vadd.f32 0.0, %v741
        %v743 = vpop.f32.mrb[0].mxu0
        %744 = vdwg.mxu0
        %v745 = vadd.f32 %v656, %v742
        %746 = vst [vmem:[%s376] sm:$0xff] %v745
        %v747 = vld [vmem:[%s372] sm:$0x1]
        %vm748 = vcmask 1040384
        %v749 = vsel %vm748, %v747, 0.0
        %750 = vadd.xlane.f32.xlu0 %v749
        %v751 = vpop.xlane.xlu0 %750
        %v752 = vmax.f32 %v751, 1.0
        %v754 = vlaneseq
        %v755 = vshrl.u32 %v754, 7
        %v756 = vsub.s32 0, %v755
        %v757 = vrot.slane %v747, %v756
        %v759 = vmul.f32 %v745, %v757
        %760 = vadd.xlane.f32.xlu0 %v759
        %v761 = vpop.xlane.xlu0 %760
        %v762 = vlaneseq
        %v763 = vshrl.u32 %v762, 7
        %v764 = vsub.s32 0, %v763
        %v765 = vrot.slane %v752, %v764
        %v766 = vrcp.pop %v765
        %v767 = vmul.f32 %v761, %v766
        %v768 = vsub.f32 %v745, %v767
        %v769 = vmul.f32 %v768, %v757
        %vm770 = vcmask 7168
        %771 = vst.msk [vmem:[%s380] sm:$0xff] %vm770, %v761
        %v772 = vmul.f32 %v769, %v769
        %773 = vadd.xlane.f32.xlu0 %v772
        %v774 = vpop.xlane.xlu0 %773
        %775 = vst.msk [vmem:[%s384] sm:$0xff] %vm770, %v774
        %p776 = scmp.lt.s32.totalorder %s18, 1
        %s777 = scalar_select %p776, %s18, 1
        %s778 = smul.addr %s777, 8
        %s779 = scalar_lea.vmem %s4, %s778
        %p780 = scmp.lt.s32.totalorder %s18, 1
        %s781 = scalar_select %p780, %s18, 1
        %s782 = smul.addr %s781, 8
        %s783 = scalar_lea.vmem %s5, %s782
        %p784 = scmp.lt.s32.totalorder %s18, 1
        %s785 = scalar_select %p784, %s18, 1
        %s786 = smul.addr %s785, 8
        %s787 = scalar_lea.vmem %s6, %s786
        // Predicated region
        $region113: #{conv2d_block_forward.1} parent=103 // pred_check
          %p788 = pneg %p137
        $region114: #{conv2d_block_forward.1} parent=103 // pred_check_branch
          %790 = sbr.rel (%p788) target = $region116
        $region115: #{conv2d_block_forward.1} parent=103 // pred_region
          _
        $region116: #{conv2d_block_forward.1} parent=103 // pred_fallthru
          _
        // Predicated region
        $region117: #{conv2d_block_forward.1} parent=103 // pred_check
          %p791 = pneg %p163
        $region118: #{conv2d_block_forward.1} parent=103 // pred_check_branch
          %793 = sbr.rel (%p791) target = $region120
        $region119: #{conv2d_block_forward.1} parent=103 // pred_region
          _
        $region120: #{conv2d_block_forward.1} parent=103 // pred_fallthru
          _
        // Predicated region
        $region121: #{conv2d_block_forward.1} parent=103 // pred_check
          %p794 = pneg %p189
        $region122: #{conv2d_block_forward.1} parent=103 // pred_check_branch
          %796 = sbr.rel (%p794) target = $region124
        $region123: #{conv2d_block_forward.1} parent=103 // pred_region
          _
        $region124: #{conv2d_block_forward.1} parent=103 // pred_fallthru
          _
      $region104: #{conv2d_block_forward.1} parent=5 // pred_fallthru
        _
      %p797 = scmp.le.s32.totalorder 2, %s13
      // Predicated region
      $region125: #{conv2d_block_forward.1} parent=5 // pred_check
        %p798 = pneg %p797
      $region126: #{conv2d_block_forward.1} parent=5 // pred_check_branch
        %800 = sbr.rel (%p798) target = $region128
      $region127: #{conv2d_block_forward.1} parent=5 // pred_region
        %s801 = ssub.s32 %s13, 2
        // Predicated region
        $region129: #{conv2d_block_forward.1} parent=127 // pred_check
          %p802 = pneg %p143
        $region130: #{conv2d_block_forward.1} parent=127 // pred_check_branch
          %804 = sbr.rel (%p802) target = $region132
        $region131: #{conv2d_block_forward.1} parent=127 // pred_region
          %p805 = scmp.lt.s32.totalorder %s19, 1
          %s806 = scalar_select %p805, %s19, 1
          %s807 = smul.addr %s806, 8
          %s808 = scalar_lea.vmem %s4, %s807
        $region132: #{conv2d_block_forward.1} parent=127 // pred_fallthru
          _
        // Predicated region
        $region133: #{conv2d_block_forward.1} parent=127 // pred_check
          %p809 = pneg %p169
        $region134: #{conv2d_block_forward.1} parent=127 // pred_check_branch
          %811 = sbr.rel (%p809) target = $region136
        $region135: #{conv2d_block_forward.1} parent=127 // pred_region
          %p812 = scmp.lt.s32.totalorder %s19, 1
          %s813 = scalar_select %p812, %s19, 1
          %s814 = smul.addr %s813, 8
          %s815 = scalar_lea.vmem %s5, %s814
        $region136: #{conv2d_block_forward.1} parent=127 // pred_fallthru
          _
        // Predicated region
        $region137: #{conv2d_block_forward.1} parent=127 // pred_check
          %p816 = pneg %p195
        $region138: #{conv2d_block_forward.1} parent=127 // pred_check_branch
          %818 = sbr.rel (%p816) target = $region140
        $region139: #{conv2d_block_forward.1} parent=127 // pred_region
          %p819 = scmp.lt.s32.totalorder %s19, 1
          %s820 = scalar_select %p819, %s19, 1
          %s821 = smul.addr %s820, 8
          %s822 = scalar_lea.vmem %s6, %s821
        $region140: #{conv2d_block_forward.1} parent=127 // pred_fallthru
          _
      $region128: #{conv2d_block_forward.1} parent=5 // pred_fallthru
        _
    $region6: #{conv2d_block_forward.1} parent=1 // loop_footer
      %s17 = sadd.s32 1, %s13
    $region7: #{conv2d_block_forward.1} parent=1 // loop_footer_branch
      %12 = sbr.rel target = $region3
    $region8: #{conv2d_block_forward.1} parent=1 // loop_exit
      _

</llo_original>
